<compile_context>
chip_gen: v7x
topology: tpu7x:2x2x1
jax: 0.10.0
libtpu: 0.0.40
codegen_flags: <defaults>
</compile_context>

<pallas_src>
import jax
import jax.numpy as jnp
from jax.experimental import pallas as pl
from jax.experimental.pallas import tpu as pltpu

NEG_SLOPE = 0.01   # nn.LeakyReLU default
BN_EPS = 1e-5      # nn.BatchNorm1d default


def res_se_block_kernel(x_ref, s1_ref, t1_ref, w1_ref, b1_ref, w2_ref,
                        wd_ref, bd_ref, f1w_ref, f1b_ref, f2w_ref, f2b_ref,
                        o_ref):
    x = x_ref[0]                                    # (Cin, L) float32, L on lanes
    L = x.shape[1]
    w1 = w1_ref[...]                                # (Cout, 3*Cin)  bn2 scale folded
    w2 = w2_ref[...]                                # (Cout, 3*Cout)
    wd = wd_ref[...]                                # (Cout, Cin)    bn_d scale folded
    cdt = w1.dtype                                  # matmul compute dtype (f32 / bf16)

    def lrelu(v):
        return jnp.where(v >= 0, v, NEG_SLOPE * v)

    def im2col3(h):
        # (C, L) -> (3*C, L): rows are [h[:, l-1]; h[:, l]; h[:, l+1]] with zero
        # padding at the sequence ends ('same' conv, k=3, pad=1).  One slab per
        # conv -> a single fused MXU matmul instead of three tap-wise dots.
        z = jnp.zeros((h.shape[0], 1), h.dtype)
        left = jnp.concatenate([z, h[:, :L - 1]], axis=1)    # h[:, l-1]
        right = jnp.concatenate([h[:, 1:], z], axis=1)       # h[:, l+1]
        return jnp.concatenate([left, h, right], axis=0)

    # bn1 (folded per-channel affine) + LeakyReLU
    h = lrelu(x * s1_ref[...] + t1_ref[...])                 # (Cin, L)

    # conv1 (k=3, 'same') fused with bn2: weight carries the bn2 scale, bias is
    # the bn2 shift.  Single MXU matmul: (Cout, 3*Cin) @ (3*Cin, L).
    h = jnp.dot(w1, im2col3(h).astype(cdt),
                preferred_element_type=jnp.float32) + b1_ref[...]
    h = lrelu(h)                                             # (Cout, L)

    # conv2 (k=3, 'same'): (Cout, 3*Cout) @ (3*Cout, L).
    out2 = jnp.dot(w2, im2col3(h).astype(cdt),
                   preferred_element_type=jnp.float32)       # (Cout, L)

    # Squeeze-excitation: kept off the MXU (VPU muls + XLU reductions + EUP exp).
    gap = jnp.mean(out2, axis=1, keepdims=True)                                  # (Cout, 1)
    z1 = lrelu(jnp.sum(f1w_ref[...] * gap, axis=0, keepdims=True) + f1b_ref[...])  # (1, r)
    z2 = jnp.sum(f2w_ref[...] * z1, axis=1, keepdims=True) + f2b_ref[...]        # (Cout, 1)
    gate = jax.nn.sigmoid(z2)                                                    # (Cout, 1)

    # Residual / downsample path: 1x1 conv with bn_d folded into the weight.
    res = jnp.dot(wd, x.astype(cdt),
                  preferred_element_type=jnp.float32) + bd_ref[...]

    o_ref[0] = lrelu(gate * out2 + res).astype(o_ref.dtype)


def res_se_block_1d(x, p, *, compute_dtype=jnp.float32):
    """x: (B, Cin, L) float32 in PyTorch NCL layout.  Returns (B, Cout, L) float32.

    compute_dtype sets the dtype of the conv/downsample matmul operands
    (jnp.bfloat16 recommended on v6e/v7x); accumulation and all elementwise
    math remain float32.
    """
    B, Cin, L = x.shape
    Cout = p["conv1_w"].shape[0]
    f32 = jnp.float32

    def bn_fold(g, b, m, v):
        s = (g / jnp.sqrt(v + BN_EPS)).astype(f32)
        return s, (b - m * s).astype(f32)

    s1, t1 = bn_fold(p["bn1_gamma"], p["bn1_beta"], p["bn1_mean"], p["bn1_var"])
    s2, t2 = bn_fold(p["bn2_gamma"], p["bn2_beta"], p["bn2_mean"], p["bn2_var"])
    sd, td = bn_fold(p["bnd_gamma"], p["bnd_beta"], p["bnd_mean"], p["bnd_var"])

    def pack_k3(w):   # (Cout, C, 3) -> (Cout, 3*C); taps ordered [l-1, l, l+1]
        return jnp.concatenate([w[:, :, 0], w[:, :, 1], w[:, :, 2]], axis=1)

    # Host-side weight packing + BN folding (free, done once).
    w1p = (pack_k3(p["conv1_w"]) * s2[:, None]).astype(compute_dtype)   # (Cout, 3*Cin)
    b1 = t2[:, None].astype(f32)                                        # (Cout, 1)
    w2p = pack_k3(p["conv2_w"]).astype(compute_dtype)                   # (Cout, 3*Cout)
    wdp = (p["down_w"][:, :, 0] * sd[:, None]).astype(compute_dtype)    # (Cout, Cin)
    bd = td[:, None].astype(f32)                                        # (Cout, 1)

    s1c = s1[:, None]                                                   # (Cin, 1)
    t1c = t1[:, None]                                                   # (Cin, 1)
    f1w = p["fc1_w"].T.astype(f32)                                      # (Cout, r)
    f1b = p["fc1_b"][None, :].astype(f32)                               # (1, r)
    f2w = p["fc2_w"].astype(f32)                                        # (Cout, r)
    f2b = p["fc2_b"][:, None].astype(f32)                               # (Cout, 1)

    consts = (s1c, t1c, w1p, b1, w2p, wdp, bd, f1w, f1b, f2w, f2b)

    def full(arr):   # whole-array block, constant index map -> fetched once
        nd = arr.ndim
        return pl.BlockSpec(arr.shape, lambda b, _nd=nd: (0,) * _nd)

    out = pl.pallas_call(
        res_se_block_kernel,
        out_shape=jax.ShapeDtypeStruct((B, Cout, L), f32),
        grid=(B,),
        in_specs=[pl.BlockSpec((1, Cin, L), lambda b: (b, 0, 0))]
                 + [full(a) for a in consts],
        out_specs=pl.BlockSpec((1, Cout, L), lambda b: (b, 0, 0)),
        compiler_params=pltpu.CompilerParams(dimension_semantics=("parallel",)),
    )(x.astype(f32), *consts)
    return out


def ref_forward(x, p):
    """Independent pure-JAX reference (eval-mode BN) for verification."""
    lrelu = lambda v: jnp.where(v >= 0, v, NEG_SLOPE * v)

    def bn(v, g, b, m, var):
        return ((v - m[None, :, None]) / jnp.sqrt(var + BN_EPS)[None, :, None]
                * g[None, :, None] + b[None, :, None])

    def conv1d(v, w, pad):
        return jax.lax.conv_general_dilated(
            v, w, window_strides=(1,), padding=[(pad, pad)],
            dimension_numbers=("NCH", "OIH", "NCH"))

    out = lrelu(bn(x, p["bn1_gamma"], p["bn1_beta"], p["bn1_mean"], p["bn1_var"]))
    out = conv1d(out, p["conv1_w"], 1)
    out = lrelu(bn(out, p["bn2_gamma"], p["bn2_beta"], p["bn2_mean"], p["bn2_var"]))
    out = conv1d(out, p["conv2_w"], 1)
    original = out
    s = jnp.mean(out, axis=2)                                   # (B, Cout)
    s = lrelu(s @ p["fc1_w"].T + p["fc1_b"])
    s = jax.nn.sigmoid(s @ p["fc2_w"].T + p["fc2_b"])
    out = s[:, :, None] * original
    res = conv1d(x, p["down_w"], 0)
    res = bn(res, p["bnd_gamma"], p["bnd_beta"], p["bnd_mean"], p["bnd_var"])
    return lrelu(out + res)


def make_params(key, cin, cout):
    r = round(cout / 16)
    ks = jax.random.split(key, 12)
    f32 = jnp.float32
    return {
        "conv1_w": 0.1 * jax.random.normal(ks[0], (cout, cin, 3), f32),
        "conv2_w": 0.1 * jax.random.normal(ks[1], (cout, cout, 3), f32),
        "down_w": 0.1 * jax.random.normal(ks[2], (cout, cin, 1), f32),
        "bn1_gamma": 1.0 + 0.1 * jax.random.normal(ks[3], (cin,), f32),
        "bn1_beta": 0.1 * jax.random.normal(ks[4], (cin,), f32),
        "bn1_mean": 0.1 * jax.random.normal(ks[5], (cin,), f32),
        "bn1_var": 1.0 + 0.5 * jax.random.uniform(ks[6], (cin,), f32),
        "bn2_gamma": 1.0 + 0.1 * jax.random.normal(ks[7], (cout,), f32),
        "bn2_beta": 0.1 * jax.random.normal(ks[8], (cout,), f32),
        "bn2_mean": 0.1 * jax.random.normal(ks[9], (cout,), f32),
        "bn2_var": 1.0 + 0.5 * jax.random.uniform(ks[10], (cout,), f32),
        "bnd_gamma": jnp.ones((cout,), f32),
        "bnd_beta": jnp.zeros((cout,), f32),
        "bnd_mean": jnp.zeros((cout,), f32),
        "bnd_var": jnp.ones((cout,), f32),
        "fc1_w": 0.2 * jax.random.normal(ks[11], (r, cout), f32),
        "fc1_b": 0.01 * jnp.arange(r, dtype=f32),
        "fc2_w": 0.2 * jax.random.normal(jax.random.fold_in(key, 99), (cout, r), f32),
        "fc2_b": 0.01 * jnp.arange(cout, dtype=f32),
    }


if __name__ == "__main__":
    # inplanes=16, outplanes=32, stride=1, kernel_size=(3,3), res=True, se=True
    B, Cin, Cout, L = 2, 16, 32, 16
    key = jax.random.PRNGKey(0)
    kx, kp = jax.random.split(key)
    x = jax.random.normal(kx, (B, Cin, L), jnp.float32)   # PyTorch NCL layout
    params = make_params(kp, Cin, Cout)

    ref = jax.block_until_ready(ref_forward(x, params))

    # float32 compute path (exact module semantics)
    out = jax.block_until_ready(res_se_block_1d(x, params))
    assert out.shape == (B, Cout, L), out.shape
    assert jnp.allclose(out, ref, rtol=1e-4, atol=1e-4), float(jnp.max(jnp.abs(out - ref)))

    # bf16 matmul-operand path (bf16-native MXU on v6e/v7x); relaxed tolerance
    # reflects bf16's ~3 significant decimal digits.
    out_bf16 = jax.block_until_ready(
        res_se_block_1d(x, params, compute_dtype=jnp.bfloat16))
    assert jnp.allclose(out_bf16, ref, rtol=5e-2, atol=5e-2), \
        float(jnp.max(jnp.abs(out_bf16 - ref)))

    print("KERNEL_OK")
</pallas_src>

<mosaic_0001>
module attributes {stable_mosaic.version = 11 : i64} {
  func.func @res_se_block_kernel(%arg0: i32, %arg1: memref<1x16x16xf32, #tpu.memory_space<vmem>>, %arg2: memref<16x1xf32, #tpu.memory_space<vmem>>, %arg3: memref<16x1xf32, #tpu.memory_space<vmem>>, %arg4: memref<32x48xf32, #tpu.memory_space<vmem>>, %arg5: memref<32x1xf32, #tpu.memory_space<vmem>>, %arg6: memref<32x96xf32, #tpu.memory_space<vmem>>, %arg7: memref<32x16xf32, #tpu.memory_space<vmem>>, %arg8: memref<32x1xf32, #tpu.memory_space<vmem>>, %arg9: memref<32x2xf32, #tpu.memory_space<vmem>>, %arg10: memref<1x2xf32, #tpu.memory_space<vmem>>, %arg11: memref<32x2xf32, #tpu.memory_space<vmem>>, %arg12: memref<32x1xf32, #tpu.memory_space<vmem>>, %arg13: memref<1x32x16xf32, #tpu.memory_space<vmem>>) attributes {dimension_semantics = [#tpu.dimension_semantics<parallel>], iteration_bounds = array<i64: 2>, scalar_prefetch = 0 : i64, scratch_operands = 0 : i64, tpu.core_type = #tpu.core_type<tc>, window_params = [{transform_indices = @transform_0, window_bounds = array<i64: 1, 16, 16>}, {pipeline_mode = #tpu.pipeline_mode<synchronous>, transform_indices = @transform_1, window_bounds = array<i64: 16, 1>}, {pipeline_mode = #tpu.pipeline_mode<synchronous>, transform_indices = @transform_2, window_bounds = array<i64: 16, 1>}, {pipeline_mode = #tpu.pipeline_mode<synchronous>, transform_indices = @transform_3, window_bounds = array<i64: 32, 48>}, {pipeline_mode = #tpu.pipeline_mode<synchronous>, transform_indices = @transform_4, window_bounds = array<i64: 32, 1>}, {pipeline_mode = #tpu.pipeline_mode<synchronous>, transform_indices = @transform_5, window_bounds = array<i64: 32, 96>}, {pipeline_mode = #tpu.pipeline_mode<synchronous>, transform_indices = @transform_6, window_bounds = array<i64: 32, 16>}, {pipeline_mode = #tpu.pipeline_mode<synchronous>, transform_indices = @transform_7, window_bounds = array<i64: 32, 1>}, {pipeline_mode = #tpu.pipeline_mode<synchronous>, transform_indices = @transform_8, window_bounds = array<i64: 32, 2>}, {pipeline_mode = #tpu.pipeline_mode<synchronous>, transform_indices = @transform_9, window_bounds = array<i64: 1, 2>}, {pipeline_mode = #tpu.pipeline_mode<synchronous>, transform_indices = @transform_10, window_bounds = array<i64: 32, 2>}, {pipeline_mode = #tpu.pipeline_mode<synchronous>, transform_indices = @transform_11, window_bounds = array<i64: 32, 1>}, {transform_indices = @transform_12, window_bounds = array<i64: 1, 32, 16>}]} {
    %c0 = arith.constant 0 : index
    %c0_0 = arith.constant 0 : index
    %c0_1 = arith.constant 0 : index
    %0 = vector.load %arg1[%c0, %c0_0, %c0_1] : memref<1x16x16xf32, #tpu.memory_space<vmem>>, vector<1x16x16xf32>
    %1 = vector.shape_cast %0 : vector<1x16x16xf32> to vector<16x16xf32>
    %c0_2 = arith.constant 0 : index
    %c0_3 = arith.constant 0 : index
    %2 = vector.load %arg4[%c0_2, %c0_3] : memref<32x48xf32, #tpu.memory_space<vmem>>, vector<32x48xf32>
    %c0_4 = arith.constant 0 : index
    %c0_5 = arith.constant 0 : index
    %3 = vector.load %arg6[%c0_4, %c0_5] : memref<32x96xf32, #tpu.memory_space<vmem>>, vector<32x96xf32>
    %c0_6 = arith.constant 0 : index
    %c0_7 = arith.constant 0 : index
    %4 = vector.load %arg7[%c0_6, %c0_7] : memref<32x16xf32, #tpu.memory_space<vmem>>, vector<32x16xf32>
    %c0_8 = arith.constant 0 : index
    %c0_9 = arith.constant 0 : index
    %5 = vector.load %arg2[%c0_8, %c0_9] : memref<16x1xf32, #tpu.memory_space<vmem>>, vector<16x1xf32>
    %6 = vector.broadcast %5 : vector<16x1xf32> to vector<16x16xf32>
    %7 = arith.mulf %1, %6 : vector<16x16xf32>
    %c0_10 = arith.constant 0 : index
    %c0_11 = arith.constant 0 : index
    %8 = vector.load %arg3[%c0_10, %c0_11] : memref<16x1xf32, #tpu.memory_space<vmem>>, vector<16x1xf32>
    %9 = vector.broadcast %8 : vector<16x1xf32> to vector<16x16xf32>
    %10 = arith.addf %7, %9 : vector<16x16xf32>
    %cst = arith.constant 0.000000e+00 : f32
    %11 = vector.broadcast %cst : f32 to vector<16x16xf32>
    %12 = arith.cmpf oge, %10, %11 : vector<16x16xf32>
    %cst_12 = arith.constant 0.00999999977 : f32
    %13 = vector.broadcast %cst_12 : f32 to vector<16x16xf32>
    %14 = arith.mulf %13, %10 : vector<16x16xf32>
    %15 = arith.select %12, %10, %14 : vector<16x16xi1>, vector<16x16xf32>
    %cst_13 = arith.constant 0.000000e+00 : f32
    %16 = vector.broadcast %cst_13 : f32 to vector<16x1xf32>
    %17 = vector.extract_strided_slice %15 {offsets = [0, 0], sizes = [16, 15], strides = [1, 1]} : vector<16x16xf32> to vector<16x15xf32>
    %18 = tpu.concatenate %16, %17 in 1 : vector<16x1xf32>, vector<16x15xf32> -> vector<16x16xf32>
    %19 = vector.extract_strided_slice %15 {offsets = [0, 1], sizes = [16, 15], strides = [1, 1]} : vector<16x16xf32> to vector<16x15xf32>
    %20 = tpu.concatenate %19, %16 in 1 : vector<16x15xf32>, vector<16x1xf32> -> vector<16x16xf32>
    %21 = tpu.concatenate %18, %15, %20 in 0 : vector<16x16xf32>, vector<16x16xf32>, vector<16x16xf32> -> vector<48x16xf32>
    %cst_14 = arith.constant dense<0.000000e+00> : vector<32x16xf32>
    %22 = tpu.matmul %2, %21, %cst_14 {dimension_numbers = #tpu.dot_dimension_numbers<[1], [0], [0], [1], [0, 0, 1, 1], [], []>} : vector<32x48xf32>, vector<48x16xf32>, vector<32x16xf32> -> vector<32x16xf32>
    %c0_15 = arith.constant 0 : index
    %c0_16 = arith.constant 0 : index
    %23 = vector.load %arg5[%c0_15, %c0_16] : memref<32x1xf32, #tpu.memory_space<vmem>>, vector<32x1xf32>
    %24 = vector.broadcast %23 : vector<32x1xf32> to vector<32x16xf32>
    %25 = arith.addf %22, %24 : vector<32x16xf32>
    %cst_17 = arith.constant 0.000000e+00 : f32
    %26 = vector.broadcast %cst_17 : f32 to vector<32x16xf32>
    %27 = arith.cmpf oge, %25, %26 : vector<32x16xf32>
    %cst_18 = arith.constant 0.00999999977 : f32
    %28 = vector.broadcast %cst_18 : f32 to vector<32x16xf32>
    %29 = arith.mulf %28, %25 : vector<32x16xf32>
    %30 = arith.select %27, %25, %29 : vector<32x16xi1>, vector<32x16xf32>
    %cst_19 = arith.constant 0.000000e+00 : f32
    %31 = vector.broadcast %cst_19 : f32 to vector<32x1xf32>
    %32 = vector.extract_strided_slice %30 {offsets = [0, 0], sizes = [32, 15], strides = [1, 1]} : vector<32x16xf32> to vector<32x15xf32>
    %33 = tpu.concatenate %31, %32 in 1 : vector<32x1xf32>, vector<32x15xf32> -> vector<32x16xf32>
    %34 = vector.extract_strided_slice %30 {offsets = [0, 1], sizes = [32, 15], strides = [1, 1]} : vector<32x16xf32> to vector<32x15xf32>
    %35 = tpu.concatenate %34, %31 in 1 : vector<32x15xf32>, vector<32x1xf32> -> vector<32x16xf32>
    %36 = tpu.concatenate %33, %30, %35 in 0 : vector<32x16xf32>, vector<32x16xf32>, vector<32x16xf32> -> vector<96x16xf32>
    %cst_20 = arith.constant dense<0.000000e+00> : vector<32x16xf32>
    %37 = tpu.matmul %3, %36, %cst_20 {dimension_numbers = #tpu.dot_dimension_numbers<[1], [0], [0], [1], [0, 0, 1, 1], [], []>} : vector<32x96xf32>, vector<96x16xf32>, vector<32x16xf32> -> vector<32x16xf32>
    %cst_21 = arith.constant dense<0.000000e+00> : vector<32xf32>
    %38 = vector.multi_reduction <add>, %37, %cst_21 [1] : vector<32x16xf32> to vector<32xf32>
    %39 = vector.shape_cast %38 : vector<32xf32> to vector<32x1xf32>
    %cst_22 = arith.constant 1.600000e+01 : f32
    %40 = vector.broadcast %cst_22 : f32 to vector<32x1xf32>
    %41 = arith.divf %39, %40 : vector<32x1xf32>
    %c0_23 = arith.constant 0 : index
    %c0_24 = arith.constant 0 : index
    %42 = vector.load %arg9[%c0_23, %c0_24] : memref<32x2xf32, #tpu.memory_space<vmem>>, vector<32x2xf32>
    %43 = vector.broadcast %41 : vector<32x1xf32> to vector<32x2xf32>
    %44 = arith.mulf %42, %43 : vector<32x2xf32>
    %cst_25 = arith.constant dense<0.000000e+00> : vector<2xf32>
    %45 = vector.multi_reduction <add>, %44, %cst_25 [0] : vector<32x2xf32> to vector<2xf32>
    %46 = vector.shape_cast %45 : vector<2xf32> to vector<1x2xf32>
    %c0_26 = arith.constant 0 : index
    %c0_27 = arith.constant 0 : index
    %47 = vector.load %arg10[%c0_26, %c0_27] : memref<1x2xf32, #tpu.memory_space<vmem>>, vector<1x2xf32>
    %48 = arith.addf %46, %47 : vector<1x2xf32>
    %cst_28 = arith.constant 0.000000e+00 : f32
    %49 = vector.broadcast %cst_28 : f32 to vector<1x2xf32>
    %50 = arith.cmpf oge, %48, %49 : vector<1x2xf32>
    %cst_29 = arith.constant 0.00999999977 : f32
    %51 = vector.broadcast %cst_29 : f32 to vector<1x2xf32>
    %52 = arith.mulf %51, %48 : vector<1x2xf32>
    %53 = arith.select %50, %48, %52 : vector<1x2xi1>, vector<1x2xf32>
    %c0_30 = arith.constant 0 : index
    %c0_31 = arith.constant 0 : index
    %54 = vector.load %arg11[%c0_30, %c0_31] : memref<32x2xf32, #tpu.memory_space<vmem>>, vector<32x2xf32>
    %55 = vector.broadcast %53 : vector<1x2xf32> to vector<32x2xf32>
    %56 = arith.mulf %54, %55 : vector<32x2xf32>
    %cst_32 = arith.constant dense<0.000000e+00> : vector<32xf32>
    %57 = vector.multi_reduction <add>, %56, %cst_32 [1] : vector<32x2xf32> to vector<32xf32>
    %58 = vector.shape_cast %57 : vector<32xf32> to vector<32x1xf32>
    %c0_33 = arith.constant 0 : index
    %c0_34 = arith.constant 0 : index
    %59 = vector.load %arg12[%c0_33, %c0_34] : memref<32x1xf32, #tpu.memory_space<vmem>>, vector<32x1xf32>
    %60 = arith.addf %58, %59 : vector<32x1xf32>
    %61 = arith.negf %60 : vector<32x1xf32>
    %62 = math.exp %61 : vector<32x1xf32>
    %cst_35 = arith.constant 1.000000e+00 : f32
    %63 = vector.broadcast %cst_35 : f32 to vector<32x1xf32>
    %64 = arith.addf %63, %62 : vector<32x1xf32>
    %65 = arith.divf %63, %64 : vector<32x1xf32>
    %cst_36 = arith.constant dense<0.000000e+00> : vector<32x16xf32>
    %66 = tpu.matmul %4, %1, %cst_36 {dimension_numbers = #tpu.dot_dimension_numbers<[1], [0], [0], [1], [0, 0, 1, 1], [], []>} : vector<32x16xf32>, vector<16x16xf32>, vector<32x16xf32> -> vector<32x16xf32>
    %c0_37 = arith.constant 0 : index
    %c0_38 = arith.constant 0 : index
    %67 = vector.load %arg8[%c0_37, %c0_38] : memref<32x1xf32, #tpu.memory_space<vmem>>, vector<32x1xf32>
    %68 = vector.broadcast %67 : vector<32x1xf32> to vector<32x16xf32>
    %69 = arith.addf %66, %68 : vector<32x16xf32>
    %70 = vector.broadcast %65 : vector<32x1xf32> to vector<32x16xf32>
    %71 = arith.mulf %70, %37 : vector<32x16xf32>
    %72 = arith.addf %71, %69 : vector<32x16xf32>
    %cst_39 = arith.constant 0.000000e+00 : f32
    %73 = vector.broadcast %cst_39 : f32 to vector<32x16xf32>
    %74 = arith.cmpf oge, %72, %73 : vector<32x16xf32>
    %cst_40 = arith.constant 0.00999999977 : f32
    %75 = vector.broadcast %cst_40 : f32 to vector<32x16xf32>
    %76 = arith.mulf %75, %72 : vector<32x16xf32>
    %77 = arith.select %74, %72, %76 : vector<32x16xi1>, vector<32x16xf32>
    %c0_41 = arith.constant 0 : index
    %c0_42 = arith.constant 0 : index
    %c0_43 = arith.constant 0 : index
    %78 = vector.load %arg13[%c0_41, %c0_42, %c0_43] : memref<1x32x16xf32, #tpu.memory_space<vmem>>, vector<1x32x16xf32>
    %79 = vector.shape_cast %78 : vector<1x32x16xf32> to vector<32x16xf32>
    %80 = vector.shape_cast %77 : vector<32x16xf32> to vector<1x32x16xf32>
    tpu.vector_store %arg13[%c0_41, %c0_42, %c0_43], %80 {strides = array<i32>} : memref<1x32x16xf32, #tpu.memory_space<vmem>>, vector<1x32x16xf32>,
    return
  }
  func.func @transform_0(%arg0: i32) -> (i32, i32, i32) {
    %c0_i32 = arith.constant 0 : i32
    %c0_i32_0 = arith.constant 0 : i32
    %c0_i32_1 = arith.constant 0 : i32
    return %arg0, %c0_i32, %c0_i32_0 : i32, i32, i32
  }
  func.func @transform_1(%arg0: i32) -> (i32, i32) {
    %c0_i32 = arith.constant 0 : i32
    %c0_i32_0 = arith.constant 0 : i32
    %c0_i32_1 = arith.constant 0 : i32
    return %c0_i32, %c0_i32_0 : i32, i32
  }
  func.func @transform_2(%arg0: i32) -> (i32, i32) {
    %c0_i32 = arith.constant 0 : i32
    %c0_i32_0 = arith.constant 0 : i32
    %c0_i32_1 = arith.constant 0 : i32
    return %c0_i32, %c0_i32_0 : i32, i32
  }
  func.func @transform_3(%arg0: i32) -> (i32, i32) {
    %c0_i32 = arith.constant 0 : i32
    %c0_i32_0 = arith.constant 0 : i32
    %c0_i32_1 = arith.constant 0 : i32
    return %c0_i32, %c0_i32_0 : i32, i32
  }
  func.func @transform_4(%arg0: i32) -> (i32, i32) {
    %c0_i32 = arith.constant 0 : i32
    %c0_i32_0 = arith.constant 0 : i32
    %c0_i32_1 = arith.constant 0 : i32
    return %c0_i32, %c0_i32_0 : i32, i32
  }
  func.func @transform_5(%arg0: i32) -> (i32, i32) {
    %c0_i32 = arith.constant 0 : i32
    %c0_i32_0 = arith.constant 0 : i32
    %c0_i32_1 = arith.constant 0 : i32
    return %c0_i32, %c0_i32_0 : i32, i32
  }
  func.func @transform_6(%arg0: i32) -> (i32, i32) {
    %c0_i32 = arith.constant 0 : i32
    %c0_i32_0 = arith.constant 0 : i32
    %c0_i32_1 = arith.constant 0 : i32
    return %c0_i32, %c0_i32_0 : i32, i32
  }
  func.func @transform_7(%arg0: i32) -> (i32, i32) {
    %c0_i32 = arith.constant 0 : i32
    %c0_i32_0 = arith.constant 0 : i32
    %c0_i32_1 = arith.constant 0 : i32
    return %c0_i32, %c0_i32_0 : i32, i32
  }
  func.func @transform_8(%arg0: i32) -> (i32, i32) {
    %c0_i32 = arith.constant 0 : i32
    %c0_i32_0 = arith.constant 0 : i32
    %c0_i32_1 = arith.constant 0 : i32
    return %c0_i32, %c0_i32_0 : i32, i32
  }
  func.func @transform_9(%arg0: i32) -> (i32, i32) {
    %c0_i32 = arith.constant 0 : i32
    %c0_i32_0 = arith.constant 0 : i32
    %c0_i32_1 = arith.constant 0 : i32
    return %c0_i32, %c0_i32_0 : i32, i32
  }
  func.func @transform_10(%arg0: i32) -> (i32, i32) {
    %c0_i32 = arith.constant 0 : i32
    %c0_i32_0 = arith.constant 0 : i32
    %c0_i32_1 = arith.constant 0 : i32
    return %c0_i32, %c0_i32_0 : i32, i32
  }
  func.func @transform_11(%arg0: i32) -> (i32, i32) {
    %c0_i32 = arith.constant 0 : i32
    %c0_i32_0 = arith.constant 0 : i32
    %c0_i32_1 = arith.constant 0 : i32
    return %c0_i32, %c0_i32_0 : i32, i32
  }
  func.func @transform_12(%arg0: i32) -> (i32, i32, i32) {
    %c0_i32 = arith.constant 0 : i32
    %c0_i32_0 = arith.constant 0 : i32
    %c0_i32_1 = arith.constant 0 : i32
    return %arg0, %c0_i32, %c0_i32_0 : i32, i32, i32
  }
}

</mosaic_0001>

<llo_original>
// kernel: tpu_custom_call.1
$region0: #{tpu_custom_call.1}
  #allocation0 [shape = 'u32[]', space=smem, size = 0x4, offset = 0x4, fixed_abs, tag = 'smem constant byte address 0x4 - core index']
  #allocation1 [shape = 'u32[144,128]{1,0:T(1,128)}', space=vmem, size = 0x12000, scoped, tag = 'internal scratch']
  %s0 = inlined_call_operand.vmem [shape: f32[2,16,16], index: 0, kind: input, shape index: {}]
  %s1 = inlined_call_operand.vmem [shape: f32[16,1], index: 1, kind: input, shape index: {}]
  %s2 = inlined_call_operand.vmem [shape: f32[16,1], index: 2, kind: input, shape index: {}]
  %s3 = inlined_call_operand.vmem [shape: f32[32,48], index: 3, kind: input, shape index: {}]
  %s4 = inlined_call_operand.vmem [shape: f32[32,1], index: 4, kind: input, shape index: {}]
  %s5 = inlined_call_operand.vmem [shape: f32[32,96], index: 5, kind: input, shape index: {}]
  %s6 = inlined_call_operand.vmem [shape: f32[32,16], index: 6, kind: input, shape index: {}]
  %s7 = inlined_call_operand.vmem [shape: f32[32,1], index: 7, kind: input, shape index: {}]
  %s8 = inlined_call_operand.vmem [shape: f32[32,2], index: 8, kind: input, shape index: {}]
  %s9 = inlined_call_operand.vmem [shape: f32[1,2], index: 9, kind: input, shape index: {}]
  %s10 = inlined_call_operand.vmem [shape: f32[32,2], index: 10, kind: input, shape index: {}]
  %s11 = inlined_call_operand.vmem [shape: f32[32,1], index: 11, kind: input, shape index: {}]
  %s12 = inlined_call_operand.vmem [shape: f32[2,32,16], index: 12, kind: output, shape index: {}]
  %s13 = sld [smem:[#allocation0]]
  $region81: #{tpu_custom_call.1} parent=0
    _
  %s15 = ssub.s32 1, %s13
  %s16 = scalar_select 0, %s15, %s13
  loop: start=0, step=1, limit=4
  $region2: #{tpu_custom_call.1} parent=0 // loop_pre_header
    _
  $region3: #{tpu_custom_call.1} parent=0 // loop_header
    %s18 = sphi 0, %s22
    %p19 = scmp.ge.s32.totalorder %s18, 4
    %s28 = sphi 0, %s30
    %s31 = sphi 0, %s28
    %s32 = sphi 0, %s31
    %s48 = sphi 0, %s32
    %s52 = sphi 0, %s52
    %s54 = sphi 0, %s52
    %s55 = sphi 0, %s54
    %s69 = sphi 0, %s55
    %s73 = sphi 0, %s73
    %s75 = sphi 0, %s73
    %s76 = sphi 0, %s75
    %s90 = sphi 0, %s76
    %s94 = sphi 0, %s94
    %s96 = sphi 0, %s94
    %s97 = sphi 0, %s96
    %s111 = sphi 0, %s97
    %s115 = sphi 0, %s115
    %s117 = sphi 0, %s115
    %s118 = sphi 0, %s117
    %s132 = sphi 0, %s118
    %s136 = sphi 0, %s136
    %s138 = sphi 0, %s136
    %s139 = sphi 0, %s138
    %s153 = sphi 0, %s139
    %s157 = sphi 0, %s157
    %s159 = sphi 0, %s157
    %s160 = sphi 0, %s159
    %s174 = sphi 0, %s160
    %s178 = sphi 0, %s178
    %s180 = sphi 0, %s178
    %s181 = sphi 0, %s180
    %s195 = sphi 0, %s181
    %s199 = sphi 0, %s199
    %s201 = sphi 0, %s199
    %s202 = sphi 0, %s201
    %s216 = sphi 0, %s202
    %s220 = sphi 0, %s220
    %s222 = sphi 0, %s220
    %s223 = sphi 0, %s222
    %s237 = sphi 0, %s223
    %s241 = sphi 0, %s241
    %s243 = sphi 0, %s241
    %s244 = sphi 0, %s243
    %s258 = sphi 0, %s244
    %s262 = sphi 0, %s262
    %s264 = sphi 0, %s262
    %s265 = sphi 0, %s264
    %s279 = sphi 0, %s265
    %s285 = sphi 0, %s287
    %s288 = sphi 0, %s285
    %s289 = sphi 0, %s288
    %s305 = sphi 0, %s289
  $region4: #{tpu_custom_call.1} parent=0 // loop_header_branch
    %21 = sbr.rel (%p19) target = $region8
  $region5: #{tpu_custom_call.1} parent=0 // loop_body
    %s23 = ssub.s32 %s18, 1
    %s24 = ssub.s32 %s18, 2
    %s25 = sadd.s32 %s18, 1
    %s26 = ssub.s32 %s18, %s25
    %p27 = scmp.eq.s32.totalorder %s26, 0
    %s29 = sadd.s32 %s28, 1
    %s30 = scalar_select %p27, %s28, %s29
    %p33 = pneg %p27
    %p34 = scmp.eq.s32.totalorder %s18, 1
    %p35 = por %p33, %p34
    %p36 = scmp.ne.s32.totalorder %s28, %s31
    %p37 = scmp.eq.s32.totalorder %s18, 0
    %p38 = por %p36, %p37
    %p39 = scmp.ne.s32.totalorder %s28, %s31
    %p40 = scmp.eq.s32.totalorder %s23, 1
    %p41 = por %p39, %p40
    %p42 = scmp.ne.s32.totalorder %s31, %s32
    %p43 = scmp.eq.s32.totalorder %s23, 0
    %p44 = por %p42, %p43
    %p45 = scmp.ne.s32.totalorder %s31, %s32
    %p46 = scmp.eq.s32.totalorder %s24, 1
    %p47 = por %p45, %p46
    %p49 = scmp.ne.s32.totalorder %s32, %s48
    %p50 = scmp.eq.s32.totalorder %s24, 0
    %p51 = por %p49, %p50
    %s53 = sadd.s32 %s52, 1
    %p56 = scmp.eq.s32.totalorder %s18, 1
    %p57 = scmp.ne.s32.totalorder %s52, %s54
    %p58 = scmp.eq.s32.totalorder %s18, 0
    %p59 = por %p57, %p58
    %p60 = scmp.ne.s32.totalorder %s52, %s54
    %p61 = scmp.eq.s32.totalorder %s23, 1
    %p62 = por %p60, %p61
    %p63 = scmp.ne.s32.totalorder %s54, %s55
    %p64 = scmp.eq.s32.totalorder %s23, 0
    %p65 = por %p63, %p64
    %p66 = scmp.ne.s32.totalorder %s54, %s55
    %p67 = scmp.eq.s32.totalorder %s24, 1
    %p68 = por %p66, %p67
    %p70 = scmp.ne.s32.totalorder %s55, %s69
    %p71 = scmp.eq.s32.totalorder %s24, 0
    %p72 = por %p70, %p71
    %s74 = sadd.s32 %s73, 1
    %p77 = scmp.eq.s32.totalorder %s18, 1
    %p78 = scmp.ne.s32.totalorder %s73, %s75
    %p79 = scmp.eq.s32.totalorder %s18, 0
    %p80 = por %p78, %p79
    %p81 = scmp.ne.s32.totalorder %s73, %s75
    %p82 = scmp.eq.s32.totalorder %s23, 1
    %p83 = por %p81, %p82
    %p84 = scmp.ne.s32.totalorder %s75, %s76
    %p85 = scmp.eq.s32.totalorder %s23, 0
    %p86 = por %p84, %p85
    %p87 = scmp.ne.s32.totalorder %s75, %s76
    %p88 = scmp.eq.s32.totalorder %s24, 1
    %p89 = por %p87, %p88
    %p91 = scmp.ne.s32.totalorder %s76, %s90
    %p92 = scmp.eq.s32.totalorder %s24, 0
    %p93 = por %p91, %p92
    %s95 = sadd.s32 %s94, 1
    %p98 = scmp.eq.s32.totalorder %s18, 1
    %p99 = scmp.ne.s32.totalorder %s94, %s96
    %p100 = scmp.eq.s32.totalorder %s18, 0
    %p101 = por %p99, %p100
    %p102 = scmp.ne.s32.totalorder %s94, %s96
    %p103 = scmp.eq.s32.totalorder %s23, 1
    %p104 = por %p102, %p103
    %p105 = scmp.ne.s32.totalorder %s96, %s97
    %p106 = scmp.eq.s32.totalorder %s23, 0
    %p107 = por %p105, %p106
    %p108 = scmp.ne.s32.totalorder %s96, %s97
    %p109 = scmp.eq.s32.totalorder %s24, 1
    %p110 = por %p108, %p109
    %p112 = scmp.ne.s32.totalorder %s97, %s111
    %p113 = scmp.eq.s32.totalorder %s24, 0
    %p114 = por %p112, %p113
    %s116 = sadd.s32 %s115, 1
    %p119 = scmp.eq.s32.totalorder %s18, 1
    %p120 = scmp.ne.s32.totalorder %s115, %s117
    %p121 = scmp.eq.s32.totalorder %s18, 0
    %p122 = por %p120, %p121
    %p123 = scmp.ne.s32.totalorder %s115, %s117
    %p124 = scmp.eq.s32.totalorder %s23, 1
    %p125 = por %p123, %p124
    %p126 = scmp.ne.s32.totalorder %s117, %s118
    %p127 = scmp.eq.s32.totalorder %s23, 0
    %p128 = por %p126, %p127
    %p129 = scmp.ne.s32.totalorder %s117, %s118
    %p130 = scmp.eq.s32.totalorder %s24, 1
    %p131 = por %p129, %p130
    %p133 = scmp.ne.s32.totalorder %s118, %s132
    %p134 = scmp.eq.s32.totalorder %s24, 0
    %p135 = por %p133, %p134
    %s137 = sadd.s32 %s136, 1
    %p140 = scmp.eq.s32.totalorder %s18, 1
    %p141 = scmp.ne.s32.totalorder %s136, %s138
    %p142 = scmp.eq.s32.totalorder %s18, 0
    %p143 = por %p141, %p142
    %p144 = scmp.ne.s32.totalorder %s136, %s138
    %p145 = scmp.eq.s32.totalorder %s23, 1
    %p146 = por %p144, %p145
    %p147 = scmp.ne.s32.totalorder %s138, %s139
    %p148 = scmp.eq.s32.totalorder %s23, 0
    %p149 = por %p147, %p148
    %p150 = scmp.ne.s32.totalorder %s138, %s139
    %p151 = scmp.eq.s32.totalorder %s24, 1
    %p152 = por %p150, %p151
    %p154 = scmp.ne.s32.totalorder %s139, %s153
    %p155 = scmp.eq.s32.totalorder %s24, 0
    %p156 = por %p154, %p155
    %s158 = sadd.s32 %s157, 1
    %p161 = scmp.eq.s32.totalorder %s18, 1
    %p162 = scmp.ne.s32.totalorder %s157, %s159
    %p163 = scmp.eq.s32.totalorder %s18, 0
    %p164 = por %p162, %p163
    %p165 = scmp.ne.s32.totalorder %s157, %s159
    %p166 = scmp.eq.s32.totalorder %s23, 1
    %p167 = por %p165, %p166
    %p168 = scmp.ne.s32.totalorder %s159, %s160
    %p169 = scmp.eq.s32.totalorder %s23, 0
    %p170 = por %p168, %p169
    %p171 = scmp.ne.s32.totalorder %s159, %s160
    %p172 = scmp.eq.s32.totalorder %s24, 1
    %p173 = por %p171, %p172
    %p175 = scmp.ne.s32.totalorder %s160, %s174
    %p176 = scmp.eq.s32.totalorder %s24, 0
    %p177 = por %p175, %p176
    %s179 = sadd.s32 %s178, 1
    %p182 = scmp.eq.s32.totalorder %s18, 1
    %p183 = scmp.ne.s32.totalorder %s178, %s180
    %p184 = scmp.eq.s32.totalorder %s18, 0
    %p185 = por %p183, %p184
    %p186 = scmp.ne.s32.totalorder %s178, %s180
    %p187 = scmp.eq.s32.totalorder %s23, 1
    %p188 = por %p186, %p187
    %p189 = scmp.ne.s32.totalorder %s180, %s181
    %p190 = scmp.eq.s32.totalorder %s23, 0
    %p191 = por %p189, %p190
    %p192 = scmp.ne.s32.totalorder %s180, %s181
    %p193 = scmp.eq.s32.totalorder %s24, 1
    %p194 = por %p192, %p193
    %p196 = scmp.ne.s32.totalorder %s181, %s195
    %p197 = scmp.eq.s32.totalorder %s24, 0
    %p198 = por %p196, %p197
    %s200 = sadd.s32 %s199, 1
    %p203 = scmp.eq.s32.totalorder %s18, 1
    %p204 = scmp.ne.s32.totalorder %s199, %s201
    %p205 = scmp.eq.s32.totalorder %s18, 0
    %p206 = por %p204, %p205
    %p207 = scmp.ne.s32.totalorder %s199, %s201
    %p208 = scmp.eq.s32.totalorder %s23, 1
    %p209 = por %p207, %p208
    %p210 = scmp.ne.s32.totalorder %s201, %s202
    %p211 = scmp.eq.s32.totalorder %s23, 0
    %p212 = por %p210, %p211
    %p213 = scmp.ne.s32.totalorder %s201, %s202
    %p214 = scmp.eq.s32.totalorder %s24, 1
    %p215 = por %p213, %p214
    %p217 = scmp.ne.s32.totalorder %s202, %s216
    %p218 = scmp.eq.s32.totalorder %s24, 0
    %p219 = por %p217, %p218
    %s221 = sadd.s32 %s220, 1
    %p224 = scmp.eq.s32.totalorder %s18, 1
    %p225 = scmp.ne.s32.totalorder %s220, %s222
    %p226 = scmp.eq.s32.totalorder %s18, 0
    %p227 = por %p225, %p226
    %p228 = scmp.ne.s32.totalorder %s220, %s222
    %p229 = scmp.eq.s32.totalorder %s23, 1
    %p230 = por %p228, %p229
    %p231 = scmp.ne.s32.totalorder %s222, %s223
    %p232 = scmp.eq.s32.totalorder %s23, 0
    %p233 = por %p231, %p232
    %p234 = scmp.ne.s32.totalorder %s222, %s223
    %p235 = scmp.eq.s32.totalorder %s24, 1
    %p236 = por %p234, %p235
    %p238 = scmp.ne.s32.totalorder %s223, %s237
    %p239 = scmp.eq.s32.totalorder %s24, 0
    %p240 = por %p238, %p239
    %s242 = sadd.s32 %s241, 1
    %p245 = scmp.eq.s32.totalorder %s18, 1
    %p246 = scmp.ne.s32.totalorder %s241, %s243
    %p247 = scmp.eq.s32.totalorder %s18, 0
    %p248 = por %p246, %p247
    %p249 = scmp.ne.s32.totalorder %s241, %s243
    %p250 = scmp.eq.s32.totalorder %s23, 1
    %p251 = por %p249, %p250
    %p252 = scmp.ne.s32.totalorder %s243, %s244
    %p253 = scmp.eq.s32.totalorder %s23, 0
    %p254 = por %p252, %p253
    %p255 = scmp.ne.s32.totalorder %s243, %s244
    %p256 = scmp.eq.s32.totalorder %s24, 1
    %p257 = por %p255, %p256
    %p259 = scmp.ne.s32.totalorder %s244, %s258
    %p260 = scmp.eq.s32.totalorder %s24, 0
    %p261 = por %p259, %p260
    %s263 = sadd.s32 %s262, 1
    %p266 = scmp.eq.s32.totalorder %s18, 1
    %p267 = scmp.ne.s32.totalorder %s262, %s264
    %p268 = scmp.eq.s32.totalorder %s18, 0
    %p269 = por %p267, %p268
    %p270 = scmp.ne.s32.totalorder %s262, %s264
    %p271 = scmp.eq.s32.totalorder %s23, 1
    %p272 = por %p270, %p271
    %p273 = scmp.ne.s32.totalorder %s264, %s265
    %p274 = scmp.eq.s32.totalorder %s23, 0
    %p275 = por %p273, %p274
    %p276 = scmp.ne.s32.totalorder %s264, %s265
    %p277 = scmp.eq.s32.totalorder %s24, 1
    %p278 = por %p276, %p277
    %p280 = scmp.ne.s32.totalorder %s265, %s279
    %p281 = scmp.eq.s32.totalorder %s24, 0
    %p282 = por %p280, %p281
    %s283 = ssub.s32 %s18, %s25
    %p284 = scmp.eq.s32.totalorder %s283, 0
    %s286 = sadd.s32 %s285, 1
    %s287 = scalar_select %p284, %s285, %s286
    %p290 = pneg %p284
    %p291 = scmp.eq.s32.totalorder %s18, 1
    %p292 = por %p290, %p291
    %p293 = scmp.ne.s32.totalorder %s285, %s288
    %p294 = scmp.eq.s32.totalorder %s18, 0
    %p295 = por %p293, %p294
    %p296 = scmp.ne.s32.totalorder %s285, %s288
    %p297 = scmp.eq.s32.totalorder %s23, 1
    %p298 = por %p296, %p297
    %p299 = scmp.ne.s32.totalorder %s288, %s289
    %p300 = scmp.eq.s32.totalorder %s23, 0
    %p301 = por %p299, %p300
    %p302 = scmp.ne.s32.totalorder %s288, %s289
    %p303 = scmp.eq.s32.totalorder %s24, 1
    %p304 = por %p302, %p303
    %p306 = scmp.ne.s32.totalorder %s289, %s305
    %p307 = scmp.eq.s32.totalorder %s24, 0
    %p308 = por %p306, %p307
    %p309 = scmp.le.s32.totalorder 1, %s18
    %p310 = scmp.lt.s32.totalorder %s18, 3
    %p311 = pnand %p309, %p310
    %p312 = pneg %p311
    // Predicated region
    $region9: #{tpu_custom_call.1} parent=5 // pred_check
      _
    $region10: #{tpu_custom_call.1} parent=5 // pred_check_branch
      %314 = sbr.rel (%p311) target = $region12
    $region11: #{tpu_custom_call.1} parent=5 // pred_region
      %s315 = ssub.s32 %s18, 1
      // Predicated region
      $region13: #{tpu_custom_call.1} parent=11 // pred_check
        %p316 = pneg %p65
      $region14: #{tpu_custom_call.1} parent=11 // pred_check_branch
        %318 = sbr.rel (%p316) target = $region16
      $region15: #{tpu_custom_call.1} parent=11 // pred_region
        _
      $region16: #{tpu_custom_call.1} parent=11 // pred_fallthru
        _
      // Predicated region
      $region17: #{tpu_custom_call.1} parent=11 // pred_check
        %p319 = pneg %p86
      $region18: #{tpu_custom_call.1} parent=11 // pred_check_branch
        %321 = sbr.rel (%p319) target = $region20
      $region19: #{tpu_custom_call.1} parent=11 // pred_region
        _
      $region20: #{tpu_custom_call.1} parent=11 // pred_fallthru
        _
      // Predicated region
      $region21: #{tpu_custom_call.1} parent=11 // pred_check
        %p322 = pneg %p107
      $region22: #{tpu_custom_call.1} parent=11 // pred_check_branch
        %324 = sbr.rel (%p322) target = $region24
      $region23: #{tpu_custom_call.1} parent=11 // pred_region
        _
      $region24: #{tpu_custom_call.1} parent=11 // pred_fallthru
        _
      // Predicated region
      $region25: #{tpu_custom_call.1} parent=11 // pred_check
        %p325 = pneg %p128
      $region26: #{tpu_custom_call.1} parent=11 // pred_check_branch
        %327 = sbr.rel (%p325) target = $region28
      $region27: #{tpu_custom_call.1} parent=11 // pred_region
        _
      $region28: #{tpu_custom_call.1} parent=11 // pred_fallthru
        _
      // Predicated region
      $region29: #{tpu_custom_call.1} parent=11 // pred_check
        %p328 = pneg %p149
      $region30: #{tpu_custom_call.1} parent=11 // pred_check_branch
        %330 = sbr.rel (%p328) target = $region32
      $region31: #{tpu_custom_call.1} parent=11 // pred_region
        _
      $region32: #{tpu_custom_call.1} parent=11 // pred_fallthru
        _
      // Predicated region
      $region33: #{tpu_custom_call.1} parent=11 // pred_check
        %p331 = pneg %p170
      $region34: #{tpu_custom_call.1} parent=11 // pred_check_branch
        %333 = sbr.rel (%p331) target = $region36
      $region35: #{tpu_custom_call.1} parent=11 // pred_region
        _
      $region36: #{tpu_custom_call.1} parent=11 // pred_fallthru
        _
      // Predicated region
      $region37: #{tpu_custom_call.1} parent=11 // pred_check
        %p334 = pneg %p191
      $region38: #{tpu_custom_call.1} parent=11 // pred_check_branch
        %336 = sbr.rel (%p334) target = $region40
      $region39: #{tpu_custom_call.1} parent=11 // pred_region
        _
      $region40: #{tpu_custom_call.1} parent=11 // pred_fallthru
        _
      // Predicated region
      $region41: #{tpu_custom_call.1} parent=11 // pred_check
        %p337 = pneg %p212
      $region42: #{tpu_custom_call.1} parent=11 // pred_check_branch
        %339 = sbr.rel (%p337) target = $region44
      $region43: #{tpu_custom_call.1} parent=11 // pred_region
        _
      $region44: #{tpu_custom_call.1} parent=11 // pred_fallthru
        _
      // Predicated region
      $region45: #{tpu_custom_call.1} parent=11 // pred_check
        %p340 = pneg %p233
      $region46: #{tpu_custom_call.1} parent=11 // pred_check_branch
        %342 = sbr.rel (%p340) target = $region48
      $region47: #{tpu_custom_call.1} parent=11 // pred_region
        _
      $region48: #{tpu_custom_call.1} parent=11 // pred_fallthru
        _
      // Predicated region
      $region49: #{tpu_custom_call.1} parent=11 // pred_check
        %p343 = pneg %p254
      $region50: #{tpu_custom_call.1} parent=11 // pred_check_branch
        %345 = sbr.rel (%p343) target = $region52
      $region51: #{tpu_custom_call.1} parent=11 // pred_region
        _
      $region52: #{tpu_custom_call.1} parent=11 // pred_fallthru
        _
      // Predicated region
      $region53: #{tpu_custom_call.1} parent=11 // pred_check
        %p346 = pneg %p275
      $region54: #{tpu_custom_call.1} parent=11 // pred_check_branch
        %348 = sbr.rel (%p346) target = $region56
      $region55: #{tpu_custom_call.1} parent=11 // pred_region
        _
      $region56: #{tpu_custom_call.1} parent=11 // pred_fallthru
        _
    $region12: #{tpu_custom_call.1} parent=5 // pred_fallthru
      _
    %p349 = scmp.lt.s32.totalorder %s18, 2
    // Predicated region
    $region57: #{tpu_custom_call.1} parent=5 // pred_check
      %p350 = pneg %p349
    $region58: #{tpu_custom_call.1} parent=5 // pred_check_branch
      %352 = sbr.rel (%p350) target = $region60
    $region59: #{tpu_custom_call.1} parent=5 // pred_region
      // Predicated region
      $region61: #{tpu_custom_call.1} parent=59 // pred_check
        %p353 = pneg %p38
      $region62: #{tpu_custom_call.1} parent=59 // pred_check_branch
        %355 = sbr.rel (%p353) target = $region64
      $region63: #{tpu_custom_call.1} parent=59 // pred_region
        %p356 = scmp.lt.s32.totalorder %s18, 1
        %s357 = scalar_select %p356, %s18, 1
        %s358 = smul.addr %s357, 2
        %s359 = smul.addr %s358, 8
        %s360 = scalar_lea.vmem %s0, %s359
      $region64: #{tpu_custom_call.1} parent=59 // pred_fallthru
        _
    $region60: #{tpu_custom_call.1} parent=5 // pred_fallthru
      _
    %p361 = scmp.le.s32.totalorder 1, %s18
    %p362 = scmp.lt.s32.totalorder %s18, 3
    %p363 = pnand %p361, %p362
    %p364 = pneg %p363
    // Predicated region
    $region65: #{tpu_custom_call.1} parent=5 // pred_check
      _
    $region66: #{tpu_custom_call.1} parent=5 // pred_check_branch
      %366 = sbr.rel (%p363) target = $region68
    $region67: #{tpu_custom_call.1} parent=5 // pred_region
      %s367 = ssub.s32 %s18, 1
      %p368 = scmp.lt.s32.totalorder %s23, 1
      %s369 = scalar_select %p368, %s23, 1
      %s370 = smul.addr %s369, 2
      %s371 = smul.addr %s370, 8
      %s372 = scalar_lea.vmem %s0, %s371
      %p373 = pneg %p44
      %p374 = pneg %p41
      %p375 = pneg %p65
      %p376 = pneg %p62
      %p377 = pneg %p86
      %p378 = pneg %p83
      %p379 = pneg %p107
      %p380 = pneg %p104
      %p381 = pneg %p128
      %p382 = pneg %p125
      %p383 = pneg %p149
      %p384 = pneg %p146
      %p385 = pneg %p170
      %p386 = pneg %p167
      %p387 = pneg %p191
      %p388 = pneg %p188
      %p389 = pneg %p212
      %p390 = pneg %p209
      %p391 = pneg %p233
      %p392 = pneg %p230
      %p393 = pneg %p254
      %p394 = pneg %p251
      %p395 = pneg %p275
      %p396 = pneg %p272
      %p397 = pneg %p301
      %p398 = pneg %p298
      %p399 = scmp.lt.s32.totalorder %s23, 1
      %s400 = scalar_select %p399, %s23, 1
      %s401 = smul.addr %s400, 4
      %s402 = smul.addr %s401, 8
      %s403 = scalar_lea.vmem %s12, %s402
      %p404 = scmp.lt.s32.totalorder %s23, 1
      %s405 = scalar_select %p404, %s23, 1
      %s406 = smul.addr %s405, 2
      %s407 = smul.addr %s406, 8
      %s408 = scalar_lea.vmem %s0, %s407
      %p409 = scmp.lt.s32.totalorder %s23, 1
      %s410 = scalar_select %p409, %s23, 1
      %s411 = smul.addr %s410, 4
      %s412 = smul.addr %s411, 8
      %s413 = scalar_lea.vmem %s12, %s412
      %v414 = vld [vmem:[%s408] sm:$0xff]
      %v415 = vld [vmem:[%s408 + $0x8] sm:$0xff]
      %v416 = vld [vmem:[%s3] sm:$0xff]
      %v417 = vld [vmem:[%s3 + $0x8] sm:$0xff]
      %v418 = vld [vmem:[%s3 + $0x10] sm:$0xff]
      %v419 = vld [vmem:[%s3 + $0x18] sm:$0xff]
      %v420 = vld [vmem:[%s5] sm:$0xff]
      %v421 = vld [vmem:[%s5 + $0x8] sm:$0xff]
      %v422 = vld [vmem:[%s5 + $0x10] sm:$0xff]
      %v423 = vld [vmem:[%s5 + $0x18] sm:$0xff]
      %v424 = vld [vmem:[%s6] sm:$0xff]
      %v425 = vld [vmem:[%s6 + $0x8] sm:$0xff]
      %v426 = vld [vmem:[%s6 + $0x10] sm:$0xff]
      %v427 = vld [vmem:[%s6 + $0x18] sm:$0xff]
      %v428 = vld [vmem:[%s1] sm:$0xff]
      %v429 = vld [vmem:[%s1 + $0x8] sm:$0xff]
      %431 = vset.pattern.permute.xlu0 0
      %432 = vperm.xlu0 %431, %v428
      %v433 = vpop.permute.xlu0 %432
      %436 = vset.pattern.permute.xlu0 0
      %437 = vperm.xlu0 %436, %v429
      %v438 = vpop.permute.xlu0 %437
      %v440 = vmul.f32 %v414, %v433
      %v441 = vmul.f32 %v415, %v438
      %v442 = vld [vmem:[%s2] sm:$0xff]
      %v443 = vld [vmem:[%s2 + $0x8] sm:$0xff]
      %445 = vset.pattern.permute.xlu0 0
      %446 = vperm.xlu0 %445, %v442
      %v447 = vpop.permute.xlu0 %446
      %450 = vset.pattern.permute.xlu0 0
      %451 = vperm.xlu0 %450, %v443
      %v452 = vpop.permute.xlu0 %451
      %v454 = vadd.f32 %v440, %v447
      %v455 = vadd.f32 %v441, %v452
      %vm456 = vcmp.ge.f32.partialorder %v454, 0.0
      %vm457 = vcmp.ge.f32.partialorder %v455, 0.0
      %v458 = vmul.f32 %v454, 0.01
      %v459 = vmul.f32 %v455, 0.01
      %v460 = vsel %vm456, %v454, %v458
      %v461 = vsel %vm457, %v455, %v459
      %464 = vrot.lane.b32.xlu0 %v460, 1
      %v465 = vpop.permute.xlu0 %464
      %466 = vrot.lane.b32.xlu0 %v461, 1
      %v467 = vpop.permute.xlu0 %466
      %vm470 = vcmask 7168
      %v471 = vsel %vm470, 0.0, %v465
      %v472 = vsel %vm470, 0.0, %v467
      %473 = vrot.lane.b32.xlu0 %v460, 127
      %v474 = vpop.permute.xlu0 %473
      %475 = vrot.lane.b32.xlu0 %v461, 127
      %v476 = vpop.permute.xlu0 %475
      %vm479 = vcmask 121856
      %v480 = vsel %vm479, %v474, 0.0
      %v481 = vsel %vm479, %v476, 0.0
      %v482 = vld [vmem:[%s4] sm:$0xff]
      %v483 = vld [vmem:[%s4 + $0x8] sm:$0xff]
      %v484 = vld [vmem:[%s4 + $0x10] sm:$0xff]
      %v485 = vld [vmem:[%s4 + $0x18] sm:$0xff]
      %487 = vset.pattern.permute.xlu0 0
      %488 = vperm.xlu0 %487, %v482
      %v489 = vpop.permute.xlu0 %488
      %492 = vset.pattern.permute.xlu0 0
      %493 = vperm.xlu0 %492, %v483
      %v494 = vpop.permute.xlu0 %493
      %497 = vset.pattern.permute.xlu0 0
      %498 = vperm.xlu0 %497, %v484
      %v499 = vpop.permute.xlu0 %498
      %502 = vset.pattern.permute.xlu0 0
      %503 = vperm.xlu0 %502, %v485
      %v504 = vpop.permute.xlu0 %503
      %vm506 = vcmask 392192
      %v508 = vsel %vm506, %v416, 0
      %v511 = vsel %vm506, %v417, 0
      %v514 = vsel %vm506, %v418, 0
      %v517 = vsel %vm506, %v419, 0
      %519 = vmatprep.subr.mxu0 0.0
      %520 = vmatpush1.msra.mxu0 %v471
      %521 = vmatprep.subr.mxu0 0.0
      %522 = vmatpush1.msra.mxu0 %v472
      %523 = vmatprep.subr.mxu0 0.0
      %524 = vmatpush1.msra.mxu0 %v460
      %525 = vmatprep.subr.mxu0 0.0
      %526 = vmatpush1.msra.mxu0 %v461
      %527 = vmatprep.subr.mxu0 0.0
      %528 = vmatpush1.msra.mxu0 %v480
      %529 = vmatprep.subr.mxu0 0.0
      %530 = vmatpush1.msra.mxu0 %v481
      %531 = vmatprep.subr.mxu0 0.0
      %532 = vmatpush1.msra.mxu0 0.0
      %533 = vmatprep.subr.mxu0 0.0
      %534 = vmatpush1.msra.mxu0 0.0
      %535 = vmatprep.subr.mxu0 0.0
      %536 = vmatpush1.msra.mxu0 0.0
      %537 = vmatprep.subr.mxu0 0.0
      %538 = vmatpush1.msra.mxu0 0.0
      %539 = vmatprep.subr.mxu0 0.0
      %540 = vmatpush1.msra.mxu0 0.0
      %541 = vmatprep.subr.mxu0 0.0
      %542 = vmatpush1.msra.mxu0 0.0
      %543 = vmatprep.subr.mxu0 0.0
      %544 = vmatpush1.msra.mxu0 0.0
      %545 = vmatprep.subr.mxu0 0.0
      %546 = vmatpush1.msra.mxu0 0.0
      %547 = vmatprep.subr.mxu0 0.0
      %548 = vmatpush1.msra.mxu0 0.0
      %549 = vmatprep.subr.mxu0 0.0
      %550 = vmatpush1.msra.mxu0 0.0
      %551 = vmatprep.subr.mxu0 0.0
      %552 = vmatpush1.msra.mxu0 0.0
      %553 = vmatprep.subr.mxu0 0.0
      %554 = vmatpush1.msra.mxu0 0.0
      %555 = vmatprep.subr.mxu0 0.0
      %556 = vmatpush1.msra.mxu0 0.0
      %557 = vmatprep.subr.mxu0 0.0
      %558 = vmatpush1.msra.mxu0 0.0
      %559 = vmatprep.subr.mxu0 0.0
      %560 = vmatpush1.msra.mxu0 0.0
      %561 = vmatprep.subr.mxu0 0.0
      %562 = vmatpush1.msra.mxu0 0.0
      %563 = vmatprep.subr.mxu0 0.0
      %564 = vmatpush1.msra.mxu0 0.0
      %565 = vmatprep.subr.mxu0 0.0
      %566 = vmatpush1.msra.mxu0 0.0
      %567 = vmatprep.subr.mxu0 0.0
      %568 = vmatpush1.msra.mxu0 0.0
      %569 = vmatprep.subr.mxu0 0.0
      %570 = vmatpush1.msra.mxu0 0.0
      %571 = vmatprep.subr.mxu0 0.0
      %572 = vmatpush1.msra.mxu0 0.0
      %573 = vmatprep.subr.mxu0 0.0
      %574 = vmatpush1.msra.mxu0 0.0
      %575 = vmatprep.subr.mxu0 0.0
      %576 = vmatpush1.msra.mxu0 0.0
      %577 = vmatprep.subr.mxu0 0.0
      %578 = vmatpush1.msra.mxu0 0.0
      %579 = vmatprep.subr.mxu0 0.0
      %580 = vmatpush1.msra.mxu0 0.0
      %581 = vmatprep.subr.mxu0 0.0
      %582 = vmatpush1.msra.mxu0 0.0
      %583 = vmatprep.mubr.f32.mxu0 0.0
      %584 = vmatmul.mubr.f32.gmra.mrb[0].mxu0 %v508
      %v585 = vpop.f32.mrb[0].mxu0
      %v586 = vadd.f32 %v489, %v585
      %v587 = vpop.f32.mrb[0].mxu0
      %588 = vmatprep.mubr.f32.mxu0 0.0
      %589 = vmatmul.mubr.f32.gmra.mrb[0].mxu0 %v511
      %v590 = vpop.f32.mrb[0].mxu0
      %v591 = vadd.f32 %v494, %v590
      %v592 = vpop.f32.mrb[0].mxu0
      %593 = vmatprep.mubr.f32.mxu0 0.0
      %594 = vmatmul.mubr.f32.gmra.mrb[0].mxu0 %v514
      %v595 = vpop.f32.mrb[0].mxu0
      %v596 = vadd.f32 %v499, %v595
      %v597 = vpop.f32.mrb[0].mxu0
      %598 = vmatprep.mubr.f32.mxu0 0.0
      %599 = vmatmul.mubr.f32.gmra.mrb[0].mxu0 %v517
      %v600 = vpop.f32.mrb[0].mxu0
      %v601 = vadd.f32 %v504, %v600
      %v602 = vpop.f32.mrb[0].mxu0
      %603 = vdwg.mxu0
      %vm604 = vcmp.ge.f32.partialorder %v586, 0.0
      %vm605 = vcmp.ge.f32.partialorder %v591, 0.0
      %vm606 = vcmp.ge.f32.partialorder %v596, 0.0
      %vm607 = vcmp.ge.f32.partialorder %v601, 0.0
      %v608 = vmul.f32 %v586, 0.01
      %v609 = vmul.f32 %v591, 0.01
      %v610 = vmul.f32 %v596, 0.01
      %v611 = vmul.f32 %v601, 0.01
      %v612 = vsel %vm604, %v586, %v608
      %v613 = vsel %vm605, %v591, %v609
      %v614 = vsel %vm606, %v596, %v610
      %v615 = vsel %vm607, %v601, %v611
      %620 = vrot.lane.b32.xlu0 %v612, 1
      %v621 = vpop.permute.xlu0 %620
      %622 = vrot.lane.b32.xlu0 %v613, 1
      %v623 = vpop.permute.xlu0 %622
      %624 = vrot.lane.b32.xlu0 %v614, 1
      %v625 = vpop.permute.xlu0 %624
      %626 = vrot.lane.b32.xlu0 %v615, 1
      %v627 = vpop.permute.xlu0 %626
      %v632 = vsel %vm470, 0.0, %v621
      %v633 = vsel %vm470, 0.0, %v623
      %v634 = vsel %vm470, 0.0, %v625
      %v635 = vsel %vm470, 0.0, %v627
      %636 = vrot.lane.b32.xlu0 %v612, 127
      %v637 = vpop.permute.xlu0 %636
      %638 = vrot.lane.b32.xlu0 %v613, 127
      %v639 = vpop.permute.xlu0 %638
      %640 = vrot.lane.b32.xlu0 %v614, 127
      %v641 = vpop.permute.xlu0 %640
      %642 = vrot.lane.b32.xlu0 %v615, 127
      %v643 = vpop.permute.xlu0 %642
      %v648 = vsel %vm479, %v637, 0.0
      %v649 = vsel %vm479, %v639, 0.0
      %v650 = vsel %vm479, %v641, 0.0
      %v651 = vsel %vm479, %v643, 0.0
      %vm652 = vcmask 785408
      %v654 = vsel %vm652, %v420, 0
      %v657 = vsel %vm652, %v421, 0
      %v660 = vsel %vm652, %v422, 0
      %v663 = vsel %vm652, %v423, 0
      %665 = vmatprep.subr.mxu0 0.0
      %666 = vmatpush1.msra.mxu0 %v632
      %667 = vmatprep.subr.mxu0 0.0
      %668 = vmatpush1.msra.mxu0 %v633
      %669 = vmatprep.subr.mxu0 0.0
      %670 = vmatpush1.msra.mxu0 %v634
      %671 = vmatprep.subr.mxu0 0.0
      %672 = vmatpush1.msra.mxu0 %v635
      %673 = vmatprep.subr.mxu0 0.0
      %674 = vmatpush1.msra.mxu0 %v612
      %675 = vmatprep.subr.mxu0 0.0
      %676 = vmatpush1.msra.mxu0 %v613
      %677 = vmatprep.subr.mxu0 0.0
      %678 = vmatpush1.msra.mxu0 %v614
      %679 = vmatprep.subr.mxu0 0.0
      %680 = vmatpush1.msra.mxu0 %v615
      %681 = vmatprep.subr.mxu0 0.0
      %682 = vmatpush1.msra.mxu0 %v648
      %683 = vmatprep.subr.mxu0 0.0
      %684 = vmatpush1.msra.mxu0 %v649
      %685 = vmatprep.subr.mxu0 0.0
      %686 = vmatpush1.msra.mxu0 %v650
      %687 = vmatprep.subr.mxu0 0.0
      %688 = vmatpush1.msra.mxu0 %v651
      %689 = vmatprep.subr.mxu0 0.0
      %690 = vmatpush1.msra.mxu0 0.0
      %691 = vmatprep.subr.mxu0 0.0
      %692 = vmatpush1.msra.mxu0 0.0
      %693 = vmatprep.subr.mxu0 0.0
      %694 = vmatpush1.msra.mxu0 0.0
      %695 = vmatprep.subr.mxu0 0.0
      %696 = vmatpush1.msra.mxu0 0.0
      %697 = vmatprep.subr.mxu0 0.0
      %698 = vmatpush1.msra.mxu0 0.0
      %699 = vmatprep.subr.mxu0 0.0
      %700 = vmatpush1.msra.mxu0 0.0
      %701 = vmatprep.subr.mxu0 0.0
      %702 = vmatpush1.msra.mxu0 0.0
      %703 = vmatprep.subr.mxu0 0.0
      %704 = vmatpush1.msra.mxu0 0.0
      %705 = vmatprep.subr.mxu0 0.0
      %706 = vmatpush1.msra.mxu0 0.0
      %707 = vmatprep.subr.mxu0 0.0
      %708 = vmatpush1.msra.mxu0 0.0
      %709 = vmatprep.subr.mxu0 0.0
      %710 = vmatpush1.msra.mxu0 0.0
      %711 = vmatprep.subr.mxu0 0.0
      %712 = vmatpush1.msra.mxu0 0.0
      %713 = vmatprep.subr.mxu0 0.0
      %714 = vmatpush1.msra.mxu0 0.0
      %715 = vmatprep.subr.mxu0 0.0
      %716 = vmatpush1.msra.mxu0 0.0
      %717 = vmatprep.subr.mxu0 0.0
      %718 = vmatpush1.msra.mxu0 0.0
      %719 = vmatprep.subr.mxu0 0.0
      %720 = vmatpush1.msra.mxu0 0.0
      %721 = vmatprep.subr.mxu0 0.0
      %722 = vmatpush1.msra.mxu0 0.0
      %723 = vmatprep.subr.mxu0 0.0
      %724 = vmatpush1.msra.mxu0 0.0
      %725 = vmatprep.subr.mxu0 0.0
      %726 = vmatpush1.msra.mxu0 0.0
      %727 = vmatprep.subr.mxu0 0.0
      %728 = vmatpush1.msra.mxu0 0.0
      %729 = vmatprep.mubr.f32.mxu0 0.0
      %730 = vmatmul.mubr.f32.gmra.mrb[0].mxu0 %v654
      %v731 = vpop.f32.mrb[0].mxu0
      %v732 = vadd.f32 0.0, %v731
      %v733 = vpop.f32.mrb[0].mxu0
      %734 = vmatprep.mubr.f32.mxu0 0.0
      %735 = vmatmul.mubr.f32.gmra.mrb[0].mxu0 %v657
      %v736 = vpop.f32.mrb[0].mxu0
      %v737 = vadd.f32 0.0, %v736
      %v738 = vpop.f32.mrb[0].mxu0
      %739 = vmatprep.mubr.f32.mxu0 0.0
      %740 = vmatmul.mubr.f32.gmra.mrb[0].mxu0 %v660
      %v741 = vpop.f32.mrb[0].mxu0
      %v742 = vadd.f32 0.0, %v741
      %v743 = vpop.f32.mrb[0].mxu0
      %744 = vmatprep.mubr.f32.mxu0 0.0
      %745 = vmatmul.mubr.f32.gmra.mrb[0].mxu0 %v663
      %v746 = vpop.f32.mrb[0].mxu0
      %v747 = vadd.f32 0.0, %v746
      %v748 = vpop.f32.mrb[0].mxu0
      %749 = vdwg.mxu0
      %vm750 = vcmask 130048
      %v751 = vsel %vm750, %v732, 0.0
      %752 = vadd.xlane.f32.xlu0 %v751
      %v753 = vpop.xlane.xlu0 %752
      %v754 = vsel %vm750, %v737, 0.0
      %755 = vadd.xlane.f32.xlu0 %v754
      %v756 = vpop.xlane.xlu0 %755
      %v757 = vsel %vm750, %v742, 0.0
      %758 = vadd.xlane.f32.xlu0 %v757
      %v759 = vpop.xlane.xlu0 %758
      %v760 = vsel %vm750, %v747, 0.0
      %761 = vadd.xlane.f32.xlu0 %v760
      %v762 = vpop.xlane.xlu0 %761
      %v763 = vrcp.pop 16.0
      %v764 = vmul.f32 %v753, %v763
      %v765 = vmul.f32 %v756, %v763
      %v766 = vmul.f32 %v759, %v763
      %v767 = vmul.f32 %v762, %v763
      %v768 = vld [vmem:[%s8] sm:$0xff]
      %v769 = vld [vmem:[%s8 + $0x8] sm:$0xff]
      %v770 = vld [vmem:[%s8 + $0x10] sm:$0xff]
      %v771 = vld [vmem:[%s8 + $0x18] sm:$0xff]
      %v772 = vmul.f32 %v768, %v764
      %v773 = vmul.f32 %v769, %v765
      %v774 = vmul.f32 %v770, %v766
      %v775 = vmul.f32 %v771, %v767
      %vm776 = vcmask 15360
      %v777 = vsel %vm776, %v772, 0.0
      %v778 = vsel %vm776, %v773, 0.0
      %v779 = vadd.f32 %v777, %v778
      %v780 = vsel %vm776, %v774, 0.0
      %v781 = vadd.f32 %v779, %v780
      %v782 = vsel %vm776, %v775, 0.0
      %v783 = vadd.f32 %v781, %v782
      %v784 = vrot.slane %v783, 4
      %v785 = vadd.f32 %v783, %v784
      %v786 = vrot.slane %v785, 2
      %v787 = vadd.f32 %v785, %v786
      %v788 = vrot.slane %v787, 1
      %v789 = vadd.f32 %v787, %v788
      %v790 = vld [vmem:[%s9] sm:$0x1]
      %v791 = vadd.f32 %v789, %v790
      %vm792 = vcmp.ge.f32.partialorder %v791, 0.0
      %v793 = vmul.f32 %v791, 0.01
      %v794 = vsel %vm792, %v791, %v793
      %v795 = vld [vmem:[%s10] sm:$0xff]
      %v796 = vld [vmem:[%s10 + $0x8] sm:$0xff]
      %v797 = vld [vmem:[%s10 + $0x10] sm:$0xff]
      %v798 = vld [vmem:[%s10 + $0x18] sm:$0xff]
      %v799 = vlaneseq
      %v800 = vshrl.u32 %v799, 7
      %v801 = vsub.s32 0, %v800
      %v802 = vrot.slane %v794, %v801
      %v803 = vmul.f32 %v795, %v802
      %v804 = vmul.f32 %v796, %v802
      %v805 = vmul.f32 %v797, %v802
      %v806 = vmul.f32 %v798, %v802
      %v807 = vsel %vm776, %v803, 0.0
      %808 = vadd.xlane.f32.xlu0 %v807
      %v809 = vpop.xlane.xlu0 %808
      %v810 = vsel %vm776, %v804, 0.0
      %811 = vadd.xlane.f32.xlu0 %v810
      %v812 = vpop.xlane.xlu0 %811
      %v813 = vsel %vm776, %v805, 0.0
      %814 = vadd.xlane.f32.xlu0 %v813
      %v815 = vpop.xlane.xlu0 %814
      %v816 = vsel %vm776, %v806, 0.0
      %817 = vadd.xlane.f32.xlu0 %v816
      %v818 = vpop.xlane.xlu0 %817
      %v819 = vld [vmem:[%s11] sm:$0xff]
      %v820 = vld [vmem:[%s11 + $0x8] sm:$0xff]
      %v821 = vld [vmem:[%s11 + $0x10] sm:$0xff]
      %v822 = vld [vmem:[%s11 + $0x18] sm:$0xff]
      %v823 = vadd.f32 %v809, %v819
      %v824 = vadd.f32 %v812, %v820
      %v825 = vadd.f32 %v815, %v821
      %v826 = vadd.f32 %v818, %v822
      %v827 = vxor.u32 %v823, 2147483648
      %v828 = vxor.u32 %v824, 2147483648
      %v829 = vxor.u32 %v825, 2147483648
      %v830 = vxor.u32 %v826, 2147483648
      %v831 = vmul.f32 %v827, 1.442695
      %v832 = vpow.pop %v831
      %v833 = vmul.f32 %v828, 1.442695
      %v834 = vpow.pop %v833
      %v835 = vmul.f32 %v829, 1.442695
      %v836 = vpow.pop %v835
      %v837 = vmul.f32 %v830, 1.442695
      %v838 = vpow.pop %v837
      %v839 = vadd.f32 %v832, 1.0
      %v840 = vadd.f32 %v834, 1.0
      %v841 = vadd.f32 %v836, 1.0
      %v842 = vadd.f32 %v838, 1.0
      %v843 = vrcp.pop %v839
      %v844 = vmul.f32 1.0, %v843
      %v845 = vrcp.pop %v840
      %v846 = vmul.f32 1.0, %v845
      %v847 = vrcp.pop %v841
      %v848 = vmul.f32 1.0, %v847
      %v849 = vrcp.pop %v842
      %v850 = vmul.f32 1.0, %v849
      %v851 = vld [vmem:[%s7] sm:$0xff]
      %v852 = vld [vmem:[%s7 + $0x8] sm:$0xff]
      %v853 = vld [vmem:[%s7 + $0x10] sm:$0xff]
      %v854 = vld [vmem:[%s7 + $0x18] sm:$0xff]
      %856 = vset.pattern.permute.xlu0 0
      %857 = vperm.xlu0 %856, %v851
      %v858 = vpop.permute.xlu0 %857
      %861 = vset.pattern.permute.xlu0 0
      %862 = vperm.xlu0 %861, %v852
      %v863 = vpop.permute.xlu0 %862
      %866 = vset.pattern.permute.xlu0 0
      %867 = vperm.xlu0 %866, %v853
      %v868 = vpop.permute.xlu0 %867
      %871 = vset.pattern.permute.xlu0 0
      %872 = vperm.xlu0 %871, %v854
      %v873 = vpop.permute.xlu0 %872
      %v876 = vsel %vm750, %v424, 0
      %v879 = vsel %vm750, %v425, 0
      %v882 = vsel %vm750, %v426, 0
      %v885 = vsel %vm750, %v427, 0
      %887 = vmatprep.subr.mxu0 0.0
      %888 = vmatpush1.msra.mxu0 %v414
      %889 = vmatprep.subr.mxu0 0.0
      %890 = vmatpush1.msra.mxu0 %v415
      %891 = vmatprep.subr.mxu0 0.0
      %892 = vmatpush1.msra.mxu0 0.0
      %893 = vmatprep.subr.mxu0 0.0
      %894 = vmatpush1.msra.mxu0 0.0
      %895 = vmatprep.subr.mxu0 0.0
      %896 = vmatpush1.msra.mxu0 0.0
      %897 = vmatprep.subr.mxu0 0.0
      %898 = vmatpush1.msra.mxu0 0.0
      %899 = vmatprep.subr.mxu0 0.0
      %900 = vmatpush1.msra.mxu0 0.0
      %901 = vmatprep.subr.mxu0 0.0
      %902 = vmatpush1.msra.mxu0 0.0
      %903 = vmatprep.subr.mxu0 0.0
      %904 = vmatpush1.msra.mxu0 0.0
      %905 = vmatprep.subr.mxu0 0.0
      %906 = vmatpush1.msra.mxu0 0.0
      %907 = vmatprep.subr.mxu0 0.0
      %908 = vmatpush1.msra.mxu0 0.0
      %909 = vmatprep.subr.mxu0 0.0
      %910 = vmatpush1.msra.mxu0 0.0
      %911 = vmatprep.subr.mxu0 0.0
      %912 = vmatpush1.msra.mxu0 0.0
      %913 = vmatprep.subr.mxu0 0.0
      %914 = vmatpush1.msra.mxu0 0.0
      %915 = vmatprep.subr.mxu0 0.0
      %916 = vmatpush1.msra.mxu0 0.0
      %917 = vmatprep.subr.mxu0 0.0
      %918 = vmatpush1.msra.mxu0 0.0
      %919 = vmatprep.subr.mxu0 0.0
      %920 = vmatpush1.msra.mxu0 0.0
      %921 = vmatprep.subr.mxu0 0.0
      %922 = vmatpush1.msra.mxu0 0.0
      %923 = vmatprep.subr.mxu0 0.0
      %924 = vmatpush1.msra.mxu0 0.0
      %925 = vmatprep.subr.mxu0 0.0
      %926 = vmatpush1.msra.mxu0 0.0
      %927 = vmatprep.subr.mxu0 0.0
      %928 = vmatpush1.msra.mxu0 0.0
      %929 = vmatprep.subr.mxu0 0.0
      %930 = vmatpush1.msra.mxu0 0.0
      %931 = vmatprep.subr.mxu0 0.0
      %932 = vmatpush1.msra.mxu0 0.0
      %933 = vmatprep.subr.mxu0 0.0
      %934 = vmatpush1.msra.mxu0 0.0
      %935 = vmatprep.subr.mxu0 0.0
      %936 = vmatpush1.msra.mxu0 0.0
      %937 = vmatprep.subr.mxu0 0.0
      %938 = vmatpush1.msra.mxu0 0.0
      %939 = vmatprep.subr.mxu0 0.0
      %940 = vmatpush1.msra.mxu0 0.0
      %941 = vmatprep.subr.mxu0 0.0
      %942 = vmatpush1.msra.mxu0 0.0
      %943 = vmatprep.subr.mxu0 0.0
      %944 = vmatpush1.msra.mxu0 0.0
      %945 = vmatprep.subr.mxu0 0.0
      %946 = vmatpush1.msra.mxu0 0.0
      %947 = vmatprep.subr.mxu0 0.0
      %948 = vmatpush1.msra.mxu0 0.0
      %949 = vmatprep.subr.mxu0 0.0
      %950 = vmatpush1.msra.mxu0 0.0
      %951 = vmatprep.mubr.f32.mxu0 0.0
      %952 = vmatmul.mubr.f32.gmra.mrb[0].mxu0 %v876
      %v953 = vpop.f32.mrb[0].mxu0
      %v954 = vadd.f32 %v858, %v953
      %v955 = vpop.f32.mrb[0].mxu0
      %956 = vmatprep.mubr.f32.mxu0 0.0
      %957 = vmatmul.mubr.f32.gmra.mrb[0].mxu0 %v879
      %v958 = vpop.f32.mrb[0].mxu0
      %v959 = vadd.f32 %v863, %v958
      %v960 = vpop.f32.mrb[0].mxu0
      %961 = vmatprep.mubr.f32.mxu0 0.0
      %962 = vmatmul.mubr.f32.gmra.mrb[0].mxu0 %v882
      %v963 = vpop.f32.mrb[0].mxu0
      %v964 = vadd.f32 %v868, %v963
      %v965 = vpop.f32.mrb[0].mxu0
      %966 = vmatprep.mubr.f32.mxu0 0.0
      %967 = vmatmul.mubr.f32.gmra.mrb[0].mxu0 %v885
      %v968 = vpop.f32.mrb[0].mxu0
      %v969 = vadd.f32 %v873, %v968
      %v970 = vpop.f32.mrb[0].mxu0
      %971 = vdwg.mxu0
      %973 = vset.pattern.permute.xlu0 0
      %974 = vperm.xlu0 %973, %v844
      %v975 = vpop.permute.xlu0 %974
      %978 = vset.pattern.permute.xlu0 0
      %979 = vperm.xlu0 %978, %v846
      %v980 = vpop.permute.xlu0 %979
      %983 = vset.pattern.permute.xlu0 0
      %984 = vperm.xlu0 %983, %v848
      %v985 = vpop.permute.xlu0 %984
      %988 = vset.pattern.permute.xlu0 0
      %989 = vperm.xlu0 %988, %v850
      %v990 = vpop.permute.xlu0 %989
      %v992 = vmul.f32 %v975, %v732
      %v993 = vmul.f32 %v980, %v737
      %v994 = vmul.f32 %v985, %v742
      %v995 = vmul.f32 %v990, %v747
      %v996 = vadd.f32 %v992, %v954
      %v997 = vadd.f32 %v993, %v959
      %v998 = vadd.f32 %v994, %v964
      %v999 = vadd.f32 %v995, %v969
      %vm1000 = vcmp.ge.f32.partialorder %v996, 0.0
      %vm1001 = vcmp.ge.f32.partialorder %v997, 0.0
      %vm1002 = vcmp.ge.f32.partialorder %v998, 0.0
      %vm1003 = vcmp.ge.f32.partialorder %v999, 0.0
      %v1004 = vmul.f32 %v996, 0.01
      %v1005 = vmul.f32 %v997, 0.01
      %v1006 = vmul.f32 %v998, 0.01
      %v1007 = vmul.f32 %v999, 0.01
      %v1008 = vsel %vm1000, %v996, %v1004
      %v1009 = vsel %vm1001, %v997, %v1005
      %v1010 = vsel %vm1002, %v998, %v1006
      %v1011 = vsel %vm1003, %v999, %v1007
      %1012 = vst.msk [vmem:[%s413] sm:$0xff] %vm750, %v1008
      %1013 = vst.msk [vmem:[%s413 + $0x8] sm:$0xff] %vm750, %v1009
      %1014 = vst.msk [vmem:[%s413 + $0x10] sm:$0xff] %vm750, %v1010
      %1015 = vst.msk [vmem:[%s413 + $0x18] sm:$0xff] %vm750, %v1011
      %p1016 = scmp.lt.s32.totalorder %s23, 1
      %s1017 = scalar_select %p1016, %s23, 1
      %s1018 = smul.addr %s1017, 4
      %s1019 = smul.addr %s1018, 8
      %s1020 = scalar_lea.vmem %s12, %s1019
      // Predicated region
      $region69: #{tpu_custom_call.1} parent=67 // pred_check
        %p1021 = pneg %p298
      $region70: #{tpu_custom_call.1} parent=67 // pred_check_branch
        %1023 = sbr.rel (%p1021) target = $region72
      $region71: #{tpu_custom_call.1} parent=67 // pred_region
        _
      $region72: #{tpu_custom_call.1} parent=67 // pred_fallthru
        _
    $region68: #{tpu_custom_call.1} parent=5 // pred_fallthru
      _
    %p1024 = scmp.le.s32.totalorder 2, %s18
    // Predicated region
    $region73: #{tpu_custom_call.1} parent=5 // pred_check
      %p1025 = pneg %p1024
    $region74: #{tpu_custom_call.1} parent=5 // pred_check_branch
      %1027 = sbr.rel (%p1025) target = $region76
    $region75: #{tpu_custom_call.1} parent=5 // pred_region
      %s1028 = ssub.s32 %s18, 2
      // Predicated region
      $region77: #{tpu_custom_call.1} parent=75 // pred_check
        %p1029 = pneg %p304
      $region78: #{tpu_custom_call.1} parent=75 // pred_check_branch
        %1031 = sbr.rel (%p1029) target = $region80
      $region79: #{tpu_custom_call.1} parent=75 // pred_region
        %p1032 = scmp.lt.s32.totalorder %s24, 1
        %s1033 = scalar_select %p1032, %s24, 1
        %s1034 = smul.addr %s1033, 4
        %s1035 = smul.addr %s1034, 8
        %s1036 = scalar_lea.vmem %s12, %s1035
      $region80: #{tpu_custom_call.1} parent=75 // pred_fallthru
        _
    $region76: #{tpu_custom_call.1} parent=5 // pred_fallthru
      _
  $region6: #{tpu_custom_call.1} parent=0 // loop_footer
    %s22 = sadd.s32 1, %s18
  $region7: #{tpu_custom_call.1} parent=0 // loop_footer_branch
    %17 = sbr.rel target = $region3
  $region8: #{tpu_custom_call.1} parent=0 // loop_exit
    _

</llo_original>
